<compile_context>
chip_gen: v7x
topology: tpu7x:2x2x1
jax: 0.10.0
libtpu: 0.0.40
codegen_flags: <defaults>
</compile_context>

<pallas_src>
import functools

import jax
import jax.numpy as jnp
from jax import lax
from jax.experimental import pallas as pl
from jax.experimental.pallas import tpu as pltpu


def _pad_sublane(c, itemsize):
    """Round channel count up to the sublane packing granularity."""
    sub = max(8, 32 // max(1, itemsize))      # f32: 8, bf16: 16, int8: 32
    return ((c + sub - 1) // sub) * sub


def _round_down_128(v):
    return max(128, (v // 128) * 128)


def _choose_tiling(N, C_in, C_out, HW, itemsize, *, step_io_bytes,
                   min_grid_steps=8, min_step_io_bytes=512 * 1024, max_nb=32):
    """Pick (nb, t_hw) so one grid step streams ~step_io_bytes of padded
    input+output, while keeping a multi-step grid (megacore / v7x 2 TCs)
    whenever each step can still stay >= min_step_io_bytes."""
    bpl = (_pad_sublane(C_in, itemsize) + _pad_sublane(C_out, itemsize)) * itemsize
    budget_lanes = max(128, step_io_bytes // bpl)

    if HW > budget_lanes:
        # Large image: one image per step, tile HW in 128-lane multiples.
        nb = 1
        t_hw = min(HW, _round_down_128(budget_lanes))
    else:
        # Small image: take the whole HW per step and block over N.
        t_hw = HW
        nb = max(1, min(N, max_nb, budget_lanes // max(HW, 1)))

    def steps(nb_, t_):
        return (-(-N // nb_)) * (-(-HW // t_))

    # Prefer >= min_grid_steps steps while each step stays reasonably large.
    while steps(nb, t_hw) < min_grid_steps:
        if nb > 1 and max(1, nb // 2) * t_hw * bpl >= min_step_io_bytes:
            nb = max(1, nb // 2)
        elif t_hw > 128 and _round_down_128(t_hw // 2) * nb * bpl >= min_step_io_bytes:
            t_hw = _round_down_128(t_hw // 2)
        else:
            break

    # nb must divide N so no ragged batch blocks ever reach the kernel.
    while N % nb:
        nb -= 1
    return nb, t_hw


def _vmem_limit_bytes(nb, C_in, C_out, t_hw, itemsize):
    """Double-buffered footprint of the padded tiles, plus slack."""
    lanes = (-(-t_hw // 128)) * 128
    x_buf = nb * _pad_sublane(C_in, itemsize) * lanes * itemsize
    o_buf = nb * _pad_sublane(C_out, itemsize) * lanes * itemsize
    wb_buf = 2 * _pad_sublane(C_out, 4) * 128 * 4        # resident weight + bias
    total = 2 * (x_buf + o_buf + wb_buf)                 # double-buffered
    return int(min(max(total + (4 << 20), 16 << 20), 48 << 20))


def _decoder_head_kernel(x_ref, w_ref, b_ref, o_ref, *,
                         apply_log_softmax, hw_total, t_hw):
    # x_ref: (Nb, C_in, t_hw)   w_ref: (C_out, C_in)   b_ref: (C_out, 1)
    # o_ref: (Nb, C_out, t_hw)
    w = w_ref[...].astype(jnp.float32)
    b = b_ref[...].astype(jnp.float32)
    nb = x_ref.shape[0]
    c_out = w.shape[0]

    # Mask out-of-bounds lanes of a ragged trailing HW block so exp() never
    # sees garbage (defensive; the store is masked by Pallas anyway).
    mask_lanes = (hw_total % t_hw) != 0
    if mask_lanes:
        lane = lax.broadcasted_iota(jnp.int32, (c_out, t_hw), 1)
        valid = (pl.program_id(1) * t_hw + lane) < hw_total

    for bidx in range(nb):                               # static unroll, nb <= 32
        xb = x_ref[bidx].astype(jnp.float32)             # (C_in, t_hw)
        acc = jnp.dot(w, xb, preferred_element_type=jnp.float32) + b
        if mask_lanes:
            acc = jnp.where(valid, acc, 0.0)
        if apply_log_softmax:
            m = jnp.max(acc, axis=0, keepdims=True)
            z = acc - m
            acc = z - jnp.log(jnp.sum(jnp.exp(z), axis=0, keepdims=True))
        o_ref[bidx] = acc.astype(o_ref.dtype)


def decoder_head_pallas(x_nchw, weight, bias, *, apply_log_softmax=True,
                        step_io_bytes=4 * 1024 * 1024):
    """log_softmax(1x1 Conv2d(x)) over channels (or just the conv).

    x_nchw: (N, C_in, H, W)    (f32 or bf16; math is f32 in-kernel)
    weight: (C_out, C_in, 1, 1)   (PyTorch layout)
    bias:   (C_out,)
    returns (N, C_out, H, W) with x's dtype.
    """
    N, C_in, H, W = x_nchw.shape
    C_out = weight.shape[0]
    HW = H * W
    itemsize = jnp.dtype(x_nchw.dtype).itemsize

    # Free reshapes / views only — no transposes, no padding copies in HBM.
    x3 = x_nchw.reshape(N, C_in, HW)               # (N, C_in, HW)
    w2d = weight.reshape(C_out, C_in).astype(jnp.float32)
    b2d = bias.reshape(C_out, 1).astype(jnp.float32)

    nb, t_hw = _choose_tiling(N, C_in, C_out, HW, itemsize,
                              step_io_bytes=step_io_bytes)
    grid = (pl.cdiv(N, nb), pl.cdiv(HW, t_hw))     # HW innermost: contiguous stream

    M = N * HW
    cost = pl.CostEstimate(
        flops=2 * M * C_in * C_out,
        transcendentals=(M * C_out if apply_log_softmax else 0),
        bytes_accessed=itemsize * M * (C_in + C_out) + 4 * (C_out * C_in + C_out),
    )

    out3 = pl.pallas_call(
        functools.partial(_decoder_head_kernel,
                          apply_log_softmax=apply_log_softmax,
                          hw_total=HW, t_hw=t_hw),
        out_shape=jax.ShapeDtypeStruct((N, C_out, HW), x_nchw.dtype),
        grid_spec=pl.GridSpec(
            grid=grid,
            in_specs=[
                pl.BlockSpec((nb, C_in, t_hw), lambda n, j: (n, 0, j)),
                pl.BlockSpec((C_out, C_in), lambda n, j: (0, 0)),   # resident
                pl.BlockSpec((C_out, 1), lambda n, j: (0, 0)),      # resident
            ],
            out_specs=pl.BlockSpec((nb, C_out, t_hw), lambda n, j: (n, 0, j)),
        ),
        compiler_params=pltpu.CompilerParams(
            dimension_semantics=("parallel", "parallel"),
            vmem_limit_bytes=_vmem_limit_bytes(nb, C_in, C_out, t_hw, itemsize),
        ),
        cost_estimate=cost,
    )(x3, w2d, b2d)

    return out3.reshape(N, C_out, H, W)


def init_outconv_params(key, in_channel, out_classes, dtype=jnp.float32):
    """Deterministic init matching nn.Conv2d default (kaiming-uniform-ish bounds)."""
    kw, kb = jax.random.split(key)
    fan_in = in_channel * 1 * 1
    bound = 1.0 / jnp.sqrt(fan_in)
    weight = jax.random.uniform(
        kw, (out_classes, in_channel, 1, 1), dtype, -bound, bound
    )
    bias = jax.random.uniform(kb, (out_classes,), dtype, -bound, bound)
    return weight, bias


def _conv_ref(x, weight, bias):
    C_out, C_in = weight.shape[0], weight.shape[1]
    return (
        jnp.einsum("nchw,oc->nohw", x, weight.reshape(C_out, C_in))
        + bias.reshape(1, C_out, 1, 1)
    )


if __name__ == "__main__":
    key = jax.random.PRNGKey(0)
    k_x, k_p, k_x2 = jax.random.split(key, 3)

    # Small shapes consistent with the Decoder head.
    N, C_in, H, W = 2, 4, 16, 16
    out_classes = 4

    x = jax.random.normal(k_x, (N, C_in, H, W), jnp.float32)
    weight, bias = init_outconv_params(k_p, C_in, out_classes)

    # Fused decoder head: 1x1 conv + log_softmax over channels (N-blocked path).
    y = jax.block_until_ready(decoder_head_pallas(x, weight, bias))
    logits_ref = _conv_ref(x, weight, bias)
    y_ref = jax.nn.log_softmax(logits_ref, axis=1)
    assert y.shape == (N, out_classes, H, W)
    assert jnp.allclose(y, y_ref, atol=1e-5, rtol=1e-5)

    # Conv-only path (plain OutConv.forward semantics).
    y_conv = jax.block_until_ready(
        decoder_head_pallas(x, weight, bias, apply_log_softmax=False)
    )
    assert jnp.allclose(y_conv, logits_ref, atol=1e-5, rtol=1e-5)

    # Larger image (HW = 1600), default multi-MiB budget (single N-blocked step).
    x_big = jax.random.normal(k_x2, (N, C_in, 40, 40), jnp.float32)
    y_big_ref = jax.nn.log_softmax(_conv_ref(x_big, weight, bias), axis=1)
    y_big = jax.block_until_ready(decoder_head_pallas(x_big, weight, bias))
    assert jnp.allclose(y_big, y_big_ref, atol=1e-5, rtol=1e-5)

    # Force the HW-tiled path (multi-step grid + ragged trailing block + lane
    # mask) with a tiny per-step budget so it is exercised at these test shapes.
    y_tiled = jax.block_until_ready(
        decoder_head_pallas(x_big, weight, bias, step_io_bytes=64 * 1024)
    )
    assert jnp.allclose(y_tiled, y_big_ref, atol=1e-5, rtol=1e-5)

    # bf16 streaming (halves HBM traffic); accumulation/softmax stay f32.
    x_bf16 = x_big.astype(jnp.bfloat16)
    y_bf16 = jax.block_until_ready(decoder_head_pallas(x_bf16, weight, bias))
    y_bf16_ref = jax.nn.log_softmax(
        _conv_ref(x_bf16.astype(jnp.float32), weight, bias), axis=1
    )
    assert jnp.allclose(y_bf16.astype(jnp.float32), y_bf16_ref, atol=5e-2, rtol=5e-2)

    print("KERNEL_OK")
</pallas_src>

<mosaic_0001>
module attributes {stable_mosaic.version = 11 : i64} {
  func.func @_decoder_head_kernel(%arg0: i32, %arg1: i32, %arg2: memref<2x4x256xf32, #tpu.memory_space<vmem>>, %arg3: memref<4x4xf32, #tpu.memory_space<vmem>>, %arg4: memref<4x1xf32, #tpu.memory_space<vmem>>, %arg5: memref<2x4x256xf32, #tpu.memory_space<vmem>>) attributes {dimension_semantics = [#tpu.dimension_semantics<parallel>, #tpu.dimension_semantics<parallel>], iteration_bounds = array<i64: 1, 1>, scalar_prefetch = 0 : i64, scratch_operands = 0 : i64, tpu.core_type = #tpu.core_type<tc>, window_params = [{transform_indices = @transform_0, window_bounds = array<i64: 2, 4, 256>}, {pipeline_mode = #tpu.pipeline_mode<synchronous>, transform_indices = @transform_1, window_bounds = array<i64: 4, 4>}, {pipeline_mode = #tpu.pipeline_mode<synchronous>, transform_indices = @transform_2, window_bounds = array<i64: 4, 1>}, {transform_indices = @transform_3, window_bounds = array<i64: 2, 4, 256>}]} {
    %c0 = arith.constant 0 : index
    %c0_0 = arith.constant 0 : index
    %0 = vector.load %arg3[%c0, %c0_0] : memref<4x4xf32, #tpu.memory_space<vmem>>, vector<4x4xf32>
    %c0_1 = arith.constant 0 : index
    %c0_2 = arith.constant 0 : index
    %1 = vector.load %arg4[%c0_1, %c0_2] : memref<4x1xf32, #tpu.memory_space<vmem>>, vector<4x1xf32>
    %c0_3 = arith.constant 0 : index
    %c0_4 = arith.constant 0 : index
    %c0_5 = arith.constant 0 : index
    %2 = vector.load %arg2[%c0_3, %c0_4, %c0_5] : memref<2x4x256xf32, #tpu.memory_space<vmem>>, vector<1x4x256xf32>
    %3 = vector.shape_cast %2 : vector<1x4x256xf32> to vector<4x256xf32>
    %cst = arith.constant dense<0.000000e+00> : vector<4x256xf32>
    %4 = tpu.matmul %0, %3, %cst {dimension_numbers = #tpu.dot_dimension_numbers<[1], [0], [0], [1], [0, 0, 1, 1], [], []>} : vector<4x4xf32>, vector<4x256xf32>, vector<4x256xf32> -> vector<4x256xf32>
    %5 = vector.broadcast %1 : vector<4x1xf32> to vector<4x256xf32>
    %6 = arith.addf %4, %5 : vector<4x256xf32>
    %cst_6 = arith.constant dense<0xFF800000> : vector<256xf32>
    %7 = vector.multi_reduction <maximumf>, %6, %cst_6 [0] : vector<4x256xf32> to vector<256xf32>
    %8 = vector.shape_cast %7 : vector<256xf32> to vector<1x256xf32>
    %9 = vector.broadcast %8 : vector<1x256xf32> to vector<4x256xf32>
    %10 = arith.subf %6, %9 : vector<4x256xf32>
    %11 = math.exp %10 : vector<4x256xf32>
    %cst_7 = arith.constant dense<0.000000e+00> : vector<256xf32>
    %12 = vector.multi_reduction <add>, %11, %cst_7 [0] : vector<4x256xf32> to vector<256xf32>
    %13 = vector.shape_cast %12 : vector<256xf32> to vector<1x256xf32>
    %14 = math.log %13 : vector<1x256xf32>
    %15 = vector.broadcast %14 : vector<1x256xf32> to vector<4x256xf32>
    %16 = arith.subf %10, %15 : vector<4x256xf32>
    %c0_8 = arith.constant 0 : index
    %c0_9 = arith.constant 0 : index
    %c0_10 = arith.constant 0 : index
    %17 = vector.load %arg5[%c0_8, %c0_9, %c0_10] : memref<2x4x256xf32, #tpu.memory_space<vmem>>, vector<1x4x256xf32>
    %18 = vector.shape_cast %17 : vector<1x4x256xf32> to vector<4x256xf32>
    %19 = vector.shape_cast %16 : vector<4x256xf32> to vector<1x4x256xf32>
    tpu.vector_store %arg5[%c0_8, %c0_9, %c0_10], %19 {strides = array<i32>} : memref<2x4x256xf32, #tpu.memory_space<vmem>>, vector<1x4x256xf32>,
    %c1 = arith.constant 1 : index
    %c0_11 = arith.constant 0 : index
    %c0_12 = arith.constant 0 : index
    %20 = vector.load %arg2[%c1, %c0_11, %c0_12] : memref<2x4x256xf32, #tpu.memory_space<vmem>>, vector<1x4x256xf32>
    %21 = vector.shape_cast %20 : vector<1x4x256xf32> to vector<4x256xf32>
    %cst_13 = arith.constant dense<0.000000e+00> : vector<4x256xf32>
    %22 = tpu.matmul %0, %21, %cst_13 {dimension_numbers = #tpu.dot_dimension_numbers<[1], [0], [0], [1], [0, 0, 1, 1], [], []>} : vector<4x4xf32>, vector<4x256xf32>, vector<4x256xf32> -> vector<4x256xf32>
    %23 = vector.broadcast %1 : vector<4x1xf32> to vector<4x256xf32>
    %24 = arith.addf %22, %23 : vector<4x256xf32>
    %cst_14 = arith.constant dense<0xFF800000> : vector<256xf32>
    %25 = vector.multi_reduction <maximumf>, %24, %cst_14 [0] : vector<4x256xf32> to vector<256xf32>
    %26 = vector.shape_cast %25 : vector<256xf32> to vector<1x256xf32>
    %27 = vector.broadcast %26 : vector<1x256xf32> to vector<4x256xf32>
    %28 = arith.subf %24, %27 : vector<4x256xf32>
    %29 = math.exp %28 : vector<4x256xf32>
    %cst_15 = arith.constant dense<0.000000e+00> : vector<256xf32>
    %30 = vector.multi_reduction <add>, %29, %cst_15 [0] : vector<4x256xf32> to vector<256xf32>
    %31 = vector.shape_cast %30 : vector<256xf32> to vector<1x256xf32>
    %32 = math.log %31 : vector<1x256xf32>
    %33 = vector.broadcast %32 : vector<1x256xf32> to vector<4x256xf32>
    %34 = arith.subf %28, %33 : vector<4x256xf32>
    %c1_16 = arith.constant 1 : index
    %c0_17 = arith.constant 0 : index
    %c0_18 = arith.constant 0 : index
    %35 = vector.load %arg5[%c1_16, %c0_17, %c0_18] : memref<2x4x256xf32, #tpu.memory_space<vmem>>, vector<1x4x256xf32>
    %36 = vector.shape_cast %35 : vector<1x4x256xf32> to vector<4x256xf32>
    %37 = vector.shape_cast %34 : vector<4x256xf32> to vector<1x4x256xf32>
    tpu.vector_store %arg5[%c1_16, %c0_17, %c0_18], %37 {strides = array<i32>} : memref<2x4x256xf32, #tpu.memory_space<vmem>>, vector<1x4x256xf32>,
    return
  }
  func.func @transform_0(%arg0: i32, %arg1: i32) -> (i32, i32, i32) {
    %c0_i32 = arith.constant 0 : i32
    %c0_i32_0 = arith.constant 0 : i32
    return %arg0, %c0_i32, %arg1 : i32, i32, i32
  }
  func.func @transform_1(%arg0: i32, %arg1: i32) -> (i32, i32) {
    %c0_i32 = arith.constant 0 : i32
    %c0_i32_0 = arith.constant 0 : i32
    %c0_i32_1 = arith.constant 0 : i32
    return %c0_i32, %c0_i32_0 : i32, i32
  }
  func.func @transform_2(%arg0: i32, %arg1: i32) -> (i32, i32) {
    %c0_i32 = arith.constant 0 : i32
    %c0_i32_0 = arith.constant 0 : i32
    %c0_i32_1 = arith.constant 0 : i32
    return %c0_i32, %c0_i32_0 : i32, i32
  }
  func.func @transform_3(%arg0: i32, %arg1: i32) -> (i32, i32, i32) {
    %c0_i32 = arith.constant 0 : i32
    %c0_i32_0 = arith.constant 0 : i32
    return %arg0, %c0_i32, %arg1 : i32, i32, i32
  }
}

</mosaic_0001>

<llo_original>
// kernel: tpu_custom_call.1
$region0: #{tpu_custom_call.1}
  #allocation0 [shape = 'u32[]', space=smem, size = 0x4, offset = 0x4, fixed_abs, tag = 'smem constant byte address 0x4 - core index']
  #allocation1 [shape = 'u32[144,128]{1,0:T(1,128)}', space=vmem, size = 0x12000, scoped, tag = 'internal scratch']
  %s0 = inlined_call_operand.hbm [shape: f32[2,4,256], index: 0, kind: input, shape index: {}]
  %s1 = inlined_call_operand.vmem [shape: f32[4,4], index: 1, kind: input, shape index: {}]
  %s2 = inlined_call_operand.vmem [shape: f32[4,1], index: 2, kind: input, shape index: {}]
  %s3 = inlined_call_operand.hbm [shape: f32[2,4,256], index: 3, kind: output, shape index: {}]
  %s4 = sld [smem:[#allocation0]]
  $region26: #{tpu_custom_call.1} parent=0
    _
  %s6 = ssub.s32 1, %s4
  %s7 = scalar_select 0, %s6, %s4
  $region1: #{tpu_custom_call.1} parent=0
    #allocation2 [shape = 'u8[8192]{0}', space=vmem, size = 0x2000, scoped, tag = 'input window, operand 0, single buffered']
    #allocation3 [shape = 's32[1]{0}', space=sflag, size = 0x4, scoped, tag = 'scoped memory for tpu_custom_call.1']
    #allocation4 [shape = 's32[1]{0}', space=sflag, size = 0x4, scoped, tag = 'scoped memory for tpu_custom_call.1']
    #allocation5 [shape = 'u8[8192]{0}', space=vmem, size = 0x2000, scoped, tag = 'output window, operand 0, single buffered']
    %8 = vsyncpa [#allocation3], 0
    %9 = vsyncpa [#allocation4], 0
    // Predicated region
    $region2: #{tpu_custom_call.1} parent=1 // pred_check
      _
    $region3: #{tpu_custom_call.1} parent=1 // pred_check_branch
      %11 = sbr.rel (0) target = $region5
    $region4: #{tpu_custom_call.1} parent=1 // pred_region
      %s13 = ssub.s32 256, 256
      %14 = vsyncadd [#allocation3], %s13
      %s15 = sshll.u32 [#allocation2], 4
      %s16 = int_to_ptr.vmem [resolvable:$true] %s15
      %21 = dma.hbm_to_vmem [thread:$0]  %s0, 256, %s16, [#allocation3], 128, 128, 8
    $region5: #{tpu_custom_call.1} parent=1 // pred_fallthru
      _
    // Predicated region
    $region6: #{tpu_custom_call.1} parent=1 // pred_check
      _
    $region7: #{tpu_custom_call.1} parent=1 // pred_check_branch
      %23 = sbr.rel (0) target = $region9
    $region8: #{tpu_custom_call.1} parent=1 // pred_region
      _
    $region9: #{tpu_custom_call.1} parent=1 // pred_fallthru
      _
    // Predicated region
    $region10: #{tpu_custom_call.1} parent=1 // pred_check
      _
    $region11: #{tpu_custom_call.1} parent=1 // pred_check_branch
      %25 = sbr.rel (0) target = $region13
    $region12: #{tpu_custom_call.1} parent=1 // pred_region
      _
    $region13: #{tpu_custom_call.1} parent=1 // pred_fallthru
      _
    // Predicated region
    $region14: #{tpu_custom_call.1} parent=1 // pred_check
      _
    $region15: #{tpu_custom_call.1} parent=1 // pred_check_branch
      %27 = sbr.rel (0) target = $region17
    $region16: #{tpu_custom_call.1} parent=1 // pred_region
      %28 = dma.done [#allocation3], 256
    $region17: #{tpu_custom_call.1} parent=1 // pred_fallthru
      _
    %v29 = vld [vmem:[%s1] sm:$0xf]
    %v30 = vld [vmem:[%s2] sm:$0xf]
    %v31 = vld [vmem:[#allocation2] sm:$0xff]
    %33 = vset.pattern.permute.xlu0 0
    %34 = vperm.xlu0 %33, %v30
    %v35 = vpop.permute.xlu0 %34
    %v38 = vcombine.high %v31, %v31
    %vm39 = vcmask 31744
    %v41 = vsel %vm39, %v29, 0
    %vm43 = vcmask 1043456
    %v44 = vsel %vm43, %v31, 0
    %v46 = vsel %vm43, %v38, 0
    %48 = vmatprep.subr.mxu0 %v46
    %49 = vmatpush1.msra.mxu0 %v44
    %50 = vmatprep.subr.mxu0 0.0
    %51 = vmatpush1.msra.mxu0 0.0
    %52 = vmatprep.subr.mxu0 0.0
    %53 = vmatpush1.msra.mxu0 0.0
    %54 = vmatprep.subr.mxu0 0.0
    %55 = vmatpush1.msra.mxu0 0.0
    %56 = vmatprep.subr.mxu0 0.0
    %57 = vmatpush1.msra.mxu0 0.0
    %58 = vmatprep.subr.mxu0 0.0
    %59 = vmatpush1.msra.mxu0 0.0
    %60 = vmatprep.subr.mxu0 0.0
    %61 = vmatpush1.msra.mxu0 0.0
    %62 = vmatprep.subr.mxu0 0.0
    %63 = vmatpush1.msra.mxu0 0.0
    %64 = vmatprep.subr.mxu0 0.0
    %65 = vmatpush1.msra.mxu0 0.0
    %66 = vmatprep.subr.mxu0 0.0
    %67 = vmatpush1.msra.mxu0 0.0
    %68 = vmatprep.subr.mxu0 0.0
    %69 = vmatpush1.msra.mxu0 0.0
    %70 = vmatprep.subr.mxu0 0.0
    %71 = vmatpush1.msra.mxu0 0.0
    %72 = vmatprep.subr.mxu0 0.0
    %73 = vmatpush1.msra.mxu0 0.0
    %74 = vmatprep.subr.mxu0 0.0
    %75 = vmatpush1.msra.mxu0 0.0
    %76 = vmatprep.subr.mxu0 0.0
    %77 = vmatpush1.msra.mxu0 0.0
    %78 = vmatprep.subr.mxu0 0.0
    %79 = vmatpush1.msra.mxu0 0.0
    %80 = vmatprep.subr.mxu0 0.0
    %81 = vmatpush1.msra.mxu0 0.0
    %82 = vmatprep.subr.mxu0 0.0
    %83 = vmatpush1.msra.mxu0 0.0
    %84 = vmatprep.subr.mxu0 0.0
    %85 = vmatpush1.msra.mxu0 0.0
    %86 = vmatprep.subr.mxu0 0.0
    %87 = vmatpush1.msra.mxu0 0.0
    %88 = vmatprep.subr.mxu0 0.0
    %89 = vmatpush1.msra.mxu0 0.0
    %90 = vmatprep.subr.mxu0 0.0
    %91 = vmatpush1.msra.mxu0 0.0
    %92 = vmatprep.subr.mxu0 0.0
    %93 = vmatpush1.msra.mxu0 0.0
    %94 = vmatprep.subr.mxu0 0.0
    %95 = vmatpush1.msra.mxu0 0.0
    %96 = vmatprep.subr.mxu0 0.0
    %97 = vmatpush1.msra.mxu0 0.0
    %98 = vmatprep.subr.mxu0 0.0
    %99 = vmatpush1.msra.mxu0 0.0
    %100 = vmatprep.subr.mxu0 0.0
    %101 = vmatpush1.msra.mxu0 0.0
    %102 = vmatprep.subr.mxu0 0.0
    %103 = vmatpush1.msra.mxu0 0.0
    %104 = vmatprep.subr.mxu0 0.0
    %105 = vmatpush1.msra.mxu0 0.0
    %106 = vmatprep.subr.mxu0 0.0
    %107 = vmatpush1.msra.mxu0 0.0
    %108 = vmatprep.subr.mxu0 0.0
    %109 = vmatpush1.msra.mxu0 0.0
    %110 = vmatprep.subr.mxu0 0.0
    %111 = vmatpush1.msra.mxu0 0.0
    %112 = vmatprep.mubr.f32.mxu0 0.0
    %113 = vmatmul.mubr.f32.gmra.mrb[0].mxu0 %v41
    %v114 = vpop.f32.mrb[0].mxu0
    %v115 = vadd.f32 %v35, %v114
    %v116 = vpop.f32.mrb[0].mxu0
    %v117 = vadd.f32 %v35, %v116
    %118 = vdwg.mxu0
    %v119 = vsel %vm43, %v115, -inf
    %v120 = vrot.slane %v119, 4
    %v121 = vmax.f32 %v119, %v120
    %v122 = vrot.slane %v121, 2
    %v123 = vmax.f32 %v121, %v122
    %v124 = vrot.slane %v123, 1
    %v125 = vmax.f32 %v123, %v124
    %v126 = vsel %vm43, %v117, -inf
    %v127 = vrot.slane %v126, 4
    %v128 = vmax.f32 %v126, %v127
    %v129 = vrot.slane %v128, 2
    %v130 = vmax.f32 %v128, %v129
    %v131 = vrot.slane %v130, 1
    %v132 = vmax.f32 %v130, %v131
    %v133 = vsub.f32 %v115, %v125
    %v134 = vsub.f32 %v117, %v132
    %v135 = vmul.f32 %v133, 1.442695
    %v136 = vpow.pop %v135
    %v137 = vmul.f32 %v134, 1.442695
    %v138 = vpow.pop %v137
    %v139 = vsel %vm43, %v136, 0.0
    %v140 = vrot.slane %v139, 4
    %v141 = vadd.f32 %v139, %v140
    %v142 = vrot.slane %v141, 2
    %v143 = vadd.f32 %v141, %v142
    %v144 = vrot.slane %v143, 1
    %v145 = vadd.f32 %v143, %v144
    %v146 = vsel %vm43, %v138, 0.0
    %v147 = vrot.slane %v146, 4
    %v148 = vadd.f32 %v146, %v147
    %v149 = vrot.slane %v148, 2
    %v150 = vadd.f32 %v148, %v149
    %v151 = vrot.slane %v150, 1
    %v152 = vadd.f32 %v150, %v151
    %v153 = vlog2.pop %v145
    %v154 = vmul.f32 %v153, 0.6931472
    %v155 = vlog2.pop %v152
    %v156 = vmul.f32 %v155, 0.6931472
    %v157 = vsub.f32 %v133, %v154
    %v158 = vsub.f32 %v134, %v156
    %v161 = vcombine.low %v157, %v158
    %163 = vst [vmem:[#allocation5] sm:$0xff] %v161
    %s164 = scalar_lea.vmem [#allocation2], 8
    %v165 = vld [vmem:[%s164] sm:$0xff]
    %v167 = vcombine.high %v165, %v165
    %v168 = vsel %vm43, %v165, 0
    %v170 = vsel %vm43, %v167, 0
    %172 = vmatprep.subr.mxu0 %v170
    %173 = vmatpush1.msra.mxu0 %v168
    %174 = vmatprep.subr.mxu0 0.0
    %175 = vmatpush1.msra.mxu0 0.0
    %176 = vmatprep.subr.mxu0 0.0
    %177 = vmatpush1.msra.mxu0 0.0
    %178 = vmatprep.subr.mxu0 0.0
    %179 = vmatpush1.msra.mxu0 0.0
    %180 = vmatprep.subr.mxu0 0.0
    %181 = vmatpush1.msra.mxu0 0.0
    %182 = vmatprep.subr.mxu0 0.0
    %183 = vmatpush1.msra.mxu0 0.0
    %184 = vmatprep.subr.mxu0 0.0
    %185 = vmatpush1.msra.mxu0 0.0
    %186 = vmatprep.subr.mxu0 0.0
    %187 = vmatpush1.msra.mxu0 0.0
    %188 = vmatprep.subr.mxu0 0.0
    %189 = vmatpush1.msra.mxu0 0.0
    %190 = vmatprep.subr.mxu0 0.0
    %191 = vmatpush1.msra.mxu0 0.0
    %192 = vmatprep.subr.mxu0 0.0
    %193 = vmatpush1.msra.mxu0 0.0
    %194 = vmatprep.subr.mxu0 0.0
    %195 = vmatpush1.msra.mxu0 0.0
    %196 = vmatprep.subr.mxu0 0.0
    %197 = vmatpush1.msra.mxu0 0.0
    %198 = vmatprep.subr.mxu0 0.0
    %199 = vmatpush1.msra.mxu0 0.0
    %200 = vmatprep.subr.mxu0 0.0
    %201 = vmatpush1.msra.mxu0 0.0
    %202 = vmatprep.subr.mxu0 0.0
    %203 = vmatpush1.msra.mxu0 0.0
    %204 = vmatprep.subr.mxu0 0.0
    %205 = vmatpush1.msra.mxu0 0.0
    %206 = vmatprep.subr.mxu0 0.0
    %207 = vmatpush1.msra.mxu0 0.0
    %208 = vmatprep.subr.mxu0 0.0
    %209 = vmatpush1.msra.mxu0 0.0
    %210 = vmatprep.subr.mxu0 0.0
    %211 = vmatpush1.msra.mxu0 0.0
    %212 = vmatprep.subr.mxu0 0.0
    %213 = vmatpush1.msra.mxu0 0.0
    %214 = vmatprep.subr.mxu0 0.0
    %215 = vmatpush1.msra.mxu0 0.0
    %216 = vmatprep.subr.mxu0 0.0
    %217 = vmatpush1.msra.mxu0 0.0
    %218 = vmatprep.subr.mxu0 0.0
    %219 = vmatpush1.msra.mxu0 0.0
    %220 = vmatprep.subr.mxu0 0.0
    %221 = vmatpush1.msra.mxu0 0.0
    %222 = vmatprep.subr.mxu0 0.0
    %223 = vmatpush1.msra.mxu0 0.0
    %224 = vmatprep.subr.mxu0 0.0
    %225 = vmatpush1.msra.mxu0 0.0
    %226 = vmatprep.subr.mxu0 0.0
    %227 = vmatpush1.msra.mxu0 0.0
    %228 = vmatprep.subr.mxu0 0.0
    %229 = vmatpush1.msra.mxu0 0.0
    %230 = vmatprep.subr.mxu0 0.0
    %231 = vmatpush1.msra.mxu0 0.0
    %232 = vmatprep.subr.mxu0 0.0
    %233 = vmatpush1.msra.mxu0 0.0
    %234 = vmatprep.subr.mxu0 0.0
    %235 = vmatpush1.msra.mxu0 0.0
    %236 = vmatprep.mubr.f32.mxu0 0.0
    %237 = vmatmul.mubr.f32.gmra.mrb[0].mxu0 %v41
    %v238 = vpop.f32.mrb[0].mxu0
    %v239 = vadd.f32 %v35, %v238
    %v240 = vpop.f32.mrb[0].mxu0
    %v241 = vadd.f32 %v35, %v240
    %242 = vdwg.mxu0
    %v243 = vsel %vm43, %v239, -inf
    %v244 = vrot.slane %v243, 4
    %v245 = vmax.f32 %v243, %v244
    %v246 = vrot.slane %v245, 2
    %v247 = vmax.f32 %v245, %v246
    %v248 = vrot.slane %v247, 1
    %v249 = vmax.f32 %v247, %v248
    %v250 = vsel %vm43, %v241, -inf
    %v251 = vrot.slane %v250, 4
    %v252 = vmax.f32 %v250, %v251
    %v253 = vrot.slane %v252, 2
    %v254 = vmax.f32 %v252, %v253
    %v255 = vrot.slane %v254, 1
    %v256 = vmax.f32 %v254, %v255
    %v257 = vsub.f32 %v239, %v249
    %v258 = vsub.f32 %v241, %v256
    %v259 = vmul.f32 %v257, 1.442695
    %v260 = vpow.pop %v259
    %v261 = vmul.f32 %v258, 1.442695
    %v262 = vpow.pop %v261
    %v263 = vsel %vm43, %v260, 0.0
    %v264 = vrot.slane %v263, 4
    %v265 = vadd.f32 %v263, %v264
    %v266 = vrot.slane %v265, 2
    %v267 = vadd.f32 %v265, %v266
    %v268 = vrot.slane %v267, 1
    %v269 = vadd.f32 %v267, %v268
    %v270 = vsel %vm43, %v262, 0.0
    %v271 = vrot.slane %v270, 4
    %v272 = vadd.f32 %v270, %v271
    %v273 = vrot.slane %v272, 2
    %v274 = vadd.f32 %v272, %v273
    %v275 = vrot.slane %v274, 1
    %v276 = vadd.f32 %v274, %v275
    %v277 = vlog2.pop %v269
    %v278 = vmul.f32 %v277, 0.6931472
    %v279 = vlog2.pop %v276
    %v280 = vmul.f32 %v279, 0.6931472
    %v281 = vsub.f32 %v257, %v278
    %v282 = vsub.f32 %v258, %v280
    %v285 = vcombine.low %v281, %v282
    %s287 = scalar_lea.vmem [#allocation5], 8
    %288 = vst [vmem:[%s287] sm:$0xff] %v285
    // Predicated region
    $region18: #{tpu_custom_call.1} parent=1 // pred_check
      _
    $region19: #{tpu_custom_call.1} parent=1 // pred_check_branch
      %290 = sbr.rel (0) target = $region21
    $region20: #{tpu_custom_call.1} parent=1 // pred_region
      %s292 = ssub.s32 256, 256
      %293 = vsyncadd [#allocation4], %s292
      %s294 = sshll.u32 [#allocation5], 4
      %s295 = int_to_ptr.vmem [resolvable:$true] %s294
      %300 = dma.vmem_to_hbm [thread:$0]  %s295, 256, %s3, [#allocation4], 128, 128, 8
    $region21: #{tpu_custom_call.1} parent=1 // pred_fallthru
      _
    // Predicated region
    $region22: #{tpu_custom_call.1} parent=1 // pred_check
      _
    $region23: #{tpu_custom_call.1} parent=1 // pred_check_branch
      %302 = sbr.rel (0) target = $region25
    $region24: #{tpu_custom_call.1} parent=1 // pred_region
      %303 = dma.done [#allocation4], 256
    $region25: #{tpu_custom_call.1} parent=1 // pred_fallthru
      _
    %304 = vsyncpa [#allocation3], 1
    %305 = vsyncpa [#allocation4], 1

</llo_original>
